<compile_context>
chip_gen: v6e
topology: v6e:2x2x1
jax: 0.10.0
libtpu: 0.0.40
codegen_flags: <defaults>
</compile_context>

<pallas_src>
import jax
import jax.numpy as jnp
from jax import lax
from jax.experimental import pallas as pl
from jax.experimental.pallas import tpu as pltpu

HIDDEN = 32


def _make_kernel(lane_slice, num_slices, compute_dtype):
    """Build the per-node-block kernel (lane_slice / num_slices / compute_dtype are static)."""

    def kernel(x_ref, w_ref, b_ref, wl_ref, bl_ref, out_ref):
        # Constants: loaded once per block (hoisted out of the slice loop).
        w = w_ref[...]            # (64, F) f32; rows 0:32 hold the NEGATED update-gate weights
        b = b_ref[...]            # (64, 1) f32; rows 0:32 negated
        wl = wl_ref[...]          # (32, 1) f32 linear-head weight
        bl = bl_ref[...]          # (1, 1)  f32 linear-head bias

        def body(i, carry):
            off = pl.multiple_of(i * lane_slice, lane_slice)
            # Natural (N, F) layout: take a lane_slice of nodes, upcast on load (x may be bf16).
            xs = x_ref[pl.ds(off, lane_slice), :].astype(jnp.float32)          # (ls, F)
            # (64, F) . (ls, F)^T -> (64, ls): contract the feature axis, nodes stay lane-dense.
            pre = lax.dot_general(w, xs, (((1,), (1,)), ((), ())),
                                  preferred_element_type=jnp.float32) + b
            pre = pre.astype(compute_dtype)
            zc = jax.nn.sigmoid(pre[:HIDDEN, :])       # == 1 - Z (weights pre-negated)
            h_t = jnp.tanh(pre[HIDDEN:, :])            # candidate state (H0 * R == 0)
            h_relu = jnp.maximum(zc * h_t, 0.0).astype(jnp.float32)            # relu(H), (32, ls)
            # 32 -> 1 head: VPU broadcast-multiply + sublane (XLU) reduce, f32 accumulate; MXU idle.
            out_ref[:, pl.ds(off, lane_slice)] = (
                jnp.sum(h_relu * wl, axis=0, keepdims=True) + bl)
            return carry

        lax.fori_loop(0, num_slices, body, 0, unroll=True)

    return kernel


def init_params(key, node_features):
    """Deterministic synthetic parameters (shapes exactly as in the PyTorch module)."""
    f = node_features
    keys = jax.random.split(key, 7)

    def glorot(k, shape):
        fan_in, fan_out = shape[-2], shape[-1]
        s = jnp.sqrt(6.0 / (fan_in + fan_out))
        return jax.random.uniform(k, shape, jnp.float32, -s, s)

    # DConv weights: (2, K, in_ch, out_ch) with K=1, in_ch = F + 32, out_ch = 32.
    w_z = glorot(keys[0], (2, 1, f + HIDDEN, HIDDEN))
    w_r = glorot(keys[1], (2, 1, f + HIDDEN, HIDDEN))   # dead when H0 == 0, kept for fidelity
    w_h = glorot(keys[2], (2, 1, f + HIDDEN, HIDDEN))
    b_z = jax.random.normal(keys[3], (HIDDEN,), jnp.float32) * 0.01
    b_r = jax.random.normal(keys[4], (HIDDEN,), jnp.float32) * 0.01
    b_h = jax.random.normal(keys[5], (HIDDEN,), jnp.float32) * 0.01
    # Linear(32, 1): weight (1, 32), bias (1,)
    w_lin = glorot(keys[6], (1, HIDDEN))
    b_lin = jnp.zeros((1,), jnp.float32)
    return dict(w_z=w_z, b_z=b_z, w_r=w_r, b_r=b_r, w_h=w_h, b_h=b_h,
                w_lin=w_lin, b_lin=b_lin)


def _fold_dconv(w):
    """K=1 diffusion conv: effective weight = W[0,0] + W[1,0]; split into x / h parts."""
    w_eff = w[0, 0] + w[1, 0]                 # (F + 32, 32)
    return w_eff[:-HIDDEN], w_eff[-HIDDEN:]   # (F, 32), (32, 32)


def recurrent_gcn_forward(x, edge_index, edge_weight, params, *,
                          max_tn=8192, compute_dtype=jnp.float32):
    # edge_index / edge_weight accepted for interface fidelity; unused by the K=1 DConv.
    del edge_index, edge_weight
    n, f = x.shape

    # Fold the K=1 DConv and fuse the two surviving gates into one transposed weight.
    # Rows 0:32 carry the NEGATED update-gate weights/bias so sigmoid(pre[:32]) == (1 - Z)
    # directly (drops the explicit (1 - z) VPU pass).
    wzx, _ = _fold_dconv(params["w_z"])                                    # (F, 32)
    whx, _ = _fold_dconv(params["w_h"])                                    # (F, 32)
    w_fused = jnp.concatenate([-wzx, whx], axis=1).T.astype(jnp.float32)   # (64, F)
    b_fused = jnp.concatenate([-params["b_z"], params["b_h"]]).reshape(2 * HIDDEN, 1)
    wl_col = params["w_lin"].reshape(HIDDEN, 1).astype(jnp.float32)        # (32, 1)
    bl = params["b_lin"].reshape(1, 1).astype(jnp.float32)                 # (1, 1)

    # Node blocks: lane-dense multiples of 128, capped at max_tn.  x stays in its natural (N, F)
    # layout (no transpose); only a cheap row-pad is added when N doesn't divide the block.
    n128 = pl.cdiv(n, 128) * 128
    tn = n128 if n128 <= max_tn else max_tn
    grid = pl.cdiv(n, tn)
    n_out = grid * tn
    if n_out != n:
        x = jnp.pad(x, ((0, n_out - n), (0, 0)))   # row-pad only; padded lanes are dropped below

    # Lane-slice width for the in-kernel elementwise loop (tn is always a multiple of 128).
    if tn % 512 == 0:
        ls = 512
    elif tn % 256 == 0:
        ls = 256
    else:
        ls = 128
    kernel = _make_kernel(ls, tn // ls, compute_dtype)

    # TODO(synk): on v7x (2 TensorCores) batch multiple graph snapshots along the node/lane axis
    # so the 'parallel' grid axis has >= 2 blocks; a single Chickenpox snapshot fills one block.
    out = pl.pallas_call(
        kernel,
        out_shape=jax.ShapeDtypeStruct((1, n_out), jnp.float32),
        grid=(grid,),
        in_specs=[
            pl.BlockSpec((tn, f), lambda i: (i, 0)),            # x node block, natural (N, F) layout
            pl.BlockSpec((2 * HIDDEN, f), lambda i: (0, 0)),    # fused (neg-z | h~) gate weights
            pl.BlockSpec((2 * HIDDEN, 1), lambda i: (0, 0)),    # fused gate biases
            pl.BlockSpec((HIDDEN, 1), lambda i: (0, 0)),        # linear head weight
            pl.BlockSpec((1, 1), lambda i: (0, 0)),             # linear head bias
        ],
        out_specs=pl.BlockSpec((1, tn), lambda i: (0, i)),      # lane-dense output slab
        compiler_params=pltpu.CompilerParams(dimension_semantics=("parallel",)),
        # Per-block VMEM: f*tn*4 (x) + tn*4 (out) + a few (64, ls) intermediates  << default scoped
        # VMEM even at tn=8192, so no vmem_limit_bytes override is needed.
    )(x, w_fused, b_fused, wl_col, bl)

    # Layout plumbing back to the module's (N, 1) output (drop padded nodes).
    return out[0, :n].reshape(n, 1)


def _reference_forward(x, params):
    """Pure-JAX reference of the FULL (unsimplified) original math, for an independent check."""
    n = x.shape[0]
    h = jnp.zeros((n, HIDDEN), jnp.float32)
    wzx, wzh = _fold_dconv(params["w_z"])
    wrx, wrh = _fold_dconv(params["w_r"])
    whx, whh = _fold_dconv(params["w_h"])
    z = jax.nn.sigmoid(x @ wzx + h @ wzh + params["b_z"])
    r = jax.nn.sigmoid(x @ wrx + h @ wrh + params["b_r"])
    h_t = jnp.tanh(x @ whx + (h * r) @ whh + params["b_h"])
    h_new = z * h + (1.0 - z) * h_t
    return jnp.maximum(h_new, 0.0) @ params["w_lin"].T + params["b_lin"]


if __name__ == "__main__":
    key = jax.random.PRNGKey(0)
    k_x, k_p, k_w = jax.random.split(key, 3)

    num_nodes = 20          # Chickenpox graph size (not a multiple of 8/128 -> exercises padding)
    node_features = 4       # lagged features

    x = jax.random.normal(k_x, (num_nodes, node_features), jnp.float32)
    # simple ring graph (unused by the K=1 diffusion conv, kept for interface fidelity)
    src = jnp.arange(num_nodes, dtype=jnp.int32)
    dst = jnp.roll(src, -1)
    edge_index = jnp.stack([src, dst], axis=0)
    edge_weight = jax.random.uniform(k_w, (num_nodes,), jnp.float32)

    params = init_params(k_p, node_features)
    ref = _reference_forward(x, params)

    # f32 path: tight check against the full (unsimplified) reference math.
    out = jax.block_until_ready(recurrent_gcn_forward(x, edge_index, edge_weight, params))
    assert out.shape == (num_nodes, 1)
    assert jnp.allclose(out, ref, atol=1e-5, rtol=1e-5)

    # bf16-streamed x + bf16 transcendentals (the v6e/v7x fast path); looser tolerance.
    out_fast = jax.block_until_ready(
        recurrent_gcn_forward(x.astype(jnp.bfloat16), edge_index, edge_weight, params,
                              compute_dtype=jnp.bfloat16))
    assert out_fast.shape == (num_nodes, 1)
    assert jnp.allclose(out_fast, ref, atol=5e-2, rtol=5e-2)

    print("KERNEL_OK")
</pallas_src>

<mosaic_0001>
module attributes {stable_mosaic.version = 11 : i64} {
  func.func @kernel(%arg0: i32, %arg1: memref<128x4xf32, #tpu.memory_space<vmem>>, %arg2: memref<64x4xf32, #tpu.memory_space<vmem>>, %arg3: memref<64x1xf32, #tpu.memory_space<vmem>>, %arg4: memref<32x1xf32, #tpu.memory_space<vmem>>, %arg5: memref<1x1xf32, #tpu.memory_space<vmem>>, %arg6: memref<1x128xf32, #tpu.memory_space<vmem>>) attributes {dimension_semantics = [#tpu.dimension_semantics<parallel>], iteration_bounds = array<i64: 1>, scalar_prefetch = 0 : i64, scratch_operands = 0 : i64, tpu.core_type = #tpu.core_type<tc>, window_params = [{transform_indices = @transform_0, window_bounds = array<i64: 128, 4>}, {pipeline_mode = #tpu.pipeline_mode<synchronous>, transform_indices = @transform_1, window_bounds = array<i64: 64, 4>}, {pipeline_mode = #tpu.pipeline_mode<synchronous>, transform_indices = @transform_2, window_bounds = array<i64: 64, 1>}, {pipeline_mode = #tpu.pipeline_mode<synchronous>, transform_indices = @transform_3, window_bounds = array<i64: 32, 1>}, {pipeline_mode = #tpu.pipeline_mode<synchronous>, transform_indices = @transform_4, window_bounds = array<i64: 1, 1>}, {transform_indices = @transform_5, window_bounds = array<i64: 1, 128>}]} {
    %c0 = arith.constant 0 : index
    %c0_0 = arith.constant 0 : index
    %0 = vector.load %arg2[%c0, %c0_0] : memref<64x4xf32, #tpu.memory_space<vmem>>, vector<64x4xf32>
    %c0_1 = arith.constant 0 : index
    %c0_2 = arith.constant 0 : index
    %1 = vector.load %arg3[%c0_1, %c0_2] : memref<64x1xf32, #tpu.memory_space<vmem>>, vector<64x1xf32>
    %c0_3 = arith.constant 0 : index
    %c0_4 = arith.constant 0 : index
    %2 = vector.load %arg4[%c0_3, %c0_4] : memref<32x1xf32, #tpu.memory_space<vmem>>, vector<32x1xf32>
    %c0_5 = arith.constant 0 : index
    %c0_6 = arith.constant 0 : index
    %3 = vector.load %arg5[%c0_5, %c0_6] : memref<1x1xf32, #tpu.memory_space<vmem>>, vector<1x1xf32>
    %c0_i32 = arith.constant 0 : i32
    %c128_i32 = arith.constant 128 : i32
    %4 = arith.muli %c0_i32, %c128_i32 : i32
    %5 = tpu.assume_multiple %4, 128 : i32
    %6 = arith.index_cast %5 : i32 to index
    %c0_7 = arith.constant 0 : index
    %7 = vector.load %arg1[%6, %c0_7] : memref<128x4xf32, #tpu.memory_space<vmem>>, vector<128x4xf32>
    %cst = arith.constant dense<0.000000e+00> : vector<64x128xf32>
    %8 = tpu.matmul %0, %7, %cst {dimension_numbers = #tpu.dot_dimension_numbers<[1], [1], [0], [0], [0, 0, 1, 0], [], []>} : vector<64x4xf32>, vector<128x4xf32>, vector<64x128xf32> -> vector<64x128xf32>
    %9 = vector.broadcast %1 : vector<64x1xf32> to vector<64x128xf32>
    %10 = arith.addf %8, %9 : vector<64x128xf32>
    %11 = vector.extract_strided_slice %10 {offsets = [0, 0], sizes = [32, 128], strides = [1, 1]} : vector<64x128xf32> to vector<32x128xf32>
    %12 = arith.negf %11 : vector<32x128xf32>
    %13 = math.exp %12 : vector<32x128xf32>
    %cst_8 = arith.constant 1.000000e+00 : f32
    %14 = vector.broadcast %cst_8 : f32 to vector<32x128xf32>
    %15 = arith.addf %14, %13 : vector<32x128xf32>
    %16 = arith.divf %14, %15 : vector<32x128xf32>
    %17 = vector.extract_strided_slice %10 {offsets = [32, 0], sizes = [32, 128], strides = [1, 1]} : vector<64x128xf32> to vector<32x128xf32>
    %18 = math.tanh %17 : vector<32x128xf32>
    %19 = arith.mulf %16, %18 : vector<32x128xf32>
    %cst_9 = arith.constant 0.000000e+00 : f32
    %20 = vector.broadcast %cst_9 : f32 to vector<32x128xf32>
    %21 = arith.maximumf %19, %20 : vector<32x128xf32>
    %22 = vector.broadcast %2 : vector<32x1xf32> to vector<32x128xf32>
    %23 = arith.mulf %21, %22 : vector<32x128xf32>
    %cst_10 = arith.constant dense<0.000000e+00> : vector<128xf32>
    %24 = vector.multi_reduction <add>, %23, %cst_10 [0] : vector<32x128xf32> to vector<128xf32>
    %25 = vector.shape_cast %24 : vector<128xf32> to vector<1x128xf32>
    %26 = vector.broadcast %3 : vector<1x1xf32> to vector<1x128xf32>
    %27 = arith.addf %25, %26 : vector<1x128xf32>
    %c0_11 = arith.constant 0 : index
    %28 = arith.index_cast %5 : i32 to index
    %29 = vector.load %arg6[%c0_11, %28] : memref<1x128xf32, #tpu.memory_space<vmem>>, vector<1x128xf32>
    tpu.vector_store %arg6[%c0_11, %28], %27 {strides = array<i32>} : memref<1x128xf32, #tpu.memory_space<vmem>>, vector<1x128xf32>,
    %c1_i32 = arith.constant 1 : i32
    return
  }
  func.func @transform_0(%arg0: i32) -> (i32, i32) {
    %c0_i32 = arith.constant 0 : i32
    %c0_i32_0 = arith.constant 0 : i32
    return %arg0, %c0_i32 : i32, i32
  }
  func.func @transform_1(%arg0: i32) -> (i32, i32) {
    %c0_i32 = arith.constant 0 : i32
    %c0_i32_0 = arith.constant 0 : i32
    %c0_i32_1 = arith.constant 0 : i32
    return %c0_i32, %c0_i32_0 : i32, i32
  }
  func.func @transform_2(%arg0: i32) -> (i32, i32) {
    %c0_i32 = arith.constant 0 : i32
    %c0_i32_0 = arith.constant 0 : i32
    %c0_i32_1 = arith.constant 0 : i32
    return %c0_i32, %c0_i32_0 : i32, i32
  }
  func.func @transform_3(%arg0: i32) -> (i32, i32) {
    %c0_i32 = arith.constant 0 : i32
    %c0_i32_0 = arith.constant 0 : i32
    %c0_i32_1 = arith.constant 0 : i32
    return %c0_i32, %c0_i32_0 : i32, i32
  }
  func.func @transform_4(%arg0: i32) -> (i32, i32) {
    %c0_i32 = arith.constant 0 : i32
    %c0_i32_0 = arith.constant 0 : i32
    %c0_i32_1 = arith.constant 0 : i32
    return %c0_i32, %c0_i32_0 : i32, i32
  }
  func.func @transform_5(%arg0: i32) -> (i32, i32) {
    %c0_i32 = arith.constant 0 : i32
    %c0_i32_0 = arith.constant 0 : i32
    return %c0_i32, %arg0 : i32, i32
  }
}

</mosaic_0001>

<llo_original>
// kernel: tpu_custom_call.1
$region0: #{tpu_custom_call.1}
  #allocation0 [shape = 'u32[]', space=smem, size = 0x4, offset = 0x4, fixed_abs, tag = 'smem constant byte address 0x4 - core index']
  #allocation1 [shape = 'u32[144,128]{1,0:T(1,128)}', space=vmem, size = 0x12000, scoped, tag = 'internal scratch']
  #allocation2 [shape = 'f32[1,1]{1,0:T(1,128)S(1)}', space=vmem, size = 0x200, scoped, tag = 'scoped memory for tpu_custom_call.1']
  %s0 = inlined_call_operand.vmem [shape: f32[128,4], index: 0, kind: input, shape index: {}]
  %s1 = inlined_call_operand.vmem [shape: f32[64,4], index: 1, kind: input, shape index: {}]
  %s2 = inlined_call_operand.vmem [shape: f32[64,1], index: 2, kind: input, shape index: {}]
  %s3 = inlined_call_operand.vmem [shape: f32[32,1], index: 3, kind: input, shape index: {}]
  %s4 = inlined_call_operand.<no memory space> [shape: f32[1,1], index: 4, kind: input, shape index: {}]
  %s5 = inlined_call_operand.hbm [shape: f32[1,128], index: 5, kind: output, shape index: {}]
  %s6 = sld [smem:[#allocation0]]
  $region30: #{tpu_custom_call.1} parent=0
    _
  %s8 = ssub.s32 1, %s6
  %s9 = scalar_select 0, %s8, %s6
  %v10 = vstv %s4
  %11 = vst [vmem:[#allocation2] sm:$0x1] %v10
  $region1: #{tpu_custom_call.1} parent=0
    #allocation3 [shape = 'u8[512]{0}', space=vmem, size = 0x400, scoped, tag = 'output window, operand 0, single buffered']
    #allocation4 [shape = 's32[1]{0}', space=sflag, size = 0x4, scoped, tag = 'scoped memory for tpu_custom_call.1']
    %12 = vsyncpa [#allocation4], 0
    // Predicated region
    $region2: #{tpu_custom_call.1} parent=1 // pred_check
      _
    $region3: #{tpu_custom_call.1} parent=1 // pred_check_branch
      %14 = sbr.rel (0) target = $region5
    $region4: #{tpu_custom_call.1} parent=1 // pred_region
      _
    $region5: #{tpu_custom_call.1} parent=1 // pred_fallthru
      _
    // Predicated region
    $region6: #{tpu_custom_call.1} parent=1 // pred_check
      _
    $region7: #{tpu_custom_call.1} parent=1 // pred_check_branch
      %16 = sbr.rel (0) target = $region9
    $region8: #{tpu_custom_call.1} parent=1 // pred_region
      _
    $region9: #{tpu_custom_call.1} parent=1 // pred_fallthru
      _
    // Predicated region
    $region10: #{tpu_custom_call.1} parent=1 // pred_check
      _
    $region11: #{tpu_custom_call.1} parent=1 // pred_check_branch
      %18 = sbr.rel (0) target = $region13
    $region12: #{tpu_custom_call.1} parent=1 // pred_region
      _
    $region13: #{tpu_custom_call.1} parent=1 // pred_fallthru
      _
    // Predicated region
    $region14: #{tpu_custom_call.1} parent=1 // pred_check
      _
    $region15: #{tpu_custom_call.1} parent=1 // pred_check_branch
      %20 = sbr.rel (0) target = $region17
    $region16: #{tpu_custom_call.1} parent=1 // pred_region
      _
    $region17: #{tpu_custom_call.1} parent=1 // pred_fallthru
      _
    // Predicated region
    $region18: #{tpu_custom_call.1} parent=1 // pred_check
      _
    $region19: #{tpu_custom_call.1} parent=1 // pred_check_branch
      %22 = sbr.rel (0) target = $region21
    $region20: #{tpu_custom_call.1} parent=1 // pred_region
      _
    $region21: #{tpu_custom_call.1} parent=1 // pred_fallthru
      _
    %v23 = vld [vmem:[%s1] sm:$0xff]
    %v24 = vld [vmem:[%s1 + $0x8] sm:$0xff]
    %v25 = vld [vmem:[%s1 + $0x10] sm:$0xff]
    %v26 = vld [vmem:[%s1 + $0x18] sm:$0xff]
    %v27 = vld [vmem:[%s1 + $0x20] sm:$0xff]
    %v28 = vld [vmem:[%s1 + $0x28] sm:$0xff]
    %v29 = vld [vmem:[%s1 + $0x30] sm:$0xff]
    %v30 = vld [vmem:[%s1 + $0x38] sm:$0xff]
    %v31 = vld [vmem:[%s2] sm:$0xff]
    %v32 = vld [vmem:[%s2 + $0x8] sm:$0xff]
    %v33 = vld [vmem:[%s2 + $0x10] sm:$0xff]
    %v34 = vld [vmem:[%s2 + $0x18] sm:$0xff]
    %v35 = vld [vmem:[%s2 + $0x20] sm:$0xff]
    %v36 = vld [vmem:[%s2 + $0x28] sm:$0xff]
    %v37 = vld [vmem:[%s2 + $0x30] sm:$0xff]
    %v38 = vld [vmem:[%s2 + $0x38] sm:$0xff]
    %v39 = vld [vmem:[%s3] sm:$0xff]
    %v40 = vld [vmem:[%s3 + $0x8] sm:$0xff]
    %v41 = vld [vmem:[%s3 + $0x10] sm:$0xff]
    %v42 = vld [vmem:[%s3 + $0x18] sm:$0xff]
    %v43 = vld [vmem:[#allocation2] sm:$0x1]
    %v44 = vld [vmem:[%s0] sm:$0xff]
    %v45 = vld [vmem:[%s0 + $0x8] sm:$0xff]
    %v46 = vld [vmem:[%s0 + $0x10] sm:$0xff]
    %v47 = vld [vmem:[%s0 + $0x18] sm:$0xff]
    %v48 = vld [vmem:[%s0 + $0x20] sm:$0xff]
    %v49 = vld [vmem:[%s0 + $0x28] sm:$0xff]
    %v50 = vld [vmem:[%s0 + $0x30] sm:$0xff]
    %v51 = vld [vmem:[%s0 + $0x38] sm:$0xff]
    %v52 = vld [vmem:[%s0 + $0x40] sm:$0xff]
    %v53 = vld [vmem:[%s0 + $0x48] sm:$0xff]
    %v54 = vld [vmem:[%s0 + $0x50] sm:$0xff]
    %v55 = vld [vmem:[%s0 + $0x58] sm:$0xff]
    %v56 = vld [vmem:[%s0 + $0x60] sm:$0xff]
    %v57 = vld [vmem:[%s0 + $0x68] sm:$0xff]
    %v58 = vld [vmem:[%s0 + $0x70] sm:$0xff]
    %v59 = vld [vmem:[%s0 + $0x78] sm:$0xff]
    %61 = vset.pattern.permute.xlu0 0
    %62 = vperm.xlu0 %61, %v31
    %v63 = vpop.permute.xlu0 %62
    %66 = vset.pattern.permute.xlu0 0
    %67 = vperm.xlu0 %66, %v32
    %v68 = vpop.permute.xlu0 %67
    %71 = vset.pattern.permute.xlu0 0
    %72 = vperm.xlu0 %71, %v33
    %v73 = vpop.permute.xlu0 %72
    %76 = vset.pattern.permute.xlu0 0
    %77 = vperm.xlu0 %76, %v34
    %v78 = vpop.permute.xlu0 %77
    %81 = vset.pattern.permute.xlu0 0
    %82 = vperm.xlu0 %81, %v35
    %v83 = vpop.permute.xlu0 %82
    %86 = vset.pattern.permute.xlu0 0
    %87 = vperm.xlu0 %86, %v36
    %v88 = vpop.permute.xlu0 %87
    %91 = vset.pattern.permute.xlu0 0
    %92 = vperm.xlu0 %91, %v37
    %v93 = vpop.permute.xlu0 %92
    %96 = vset.pattern.permute.xlu0 0
    %97 = vperm.xlu0 %96, %v38
    %v98 = vpop.permute.xlu0 %97
    %vm100 = vcmask 31744
    %v102 = vsel %vm100, %v23, 0
    %v105 = vsel %vm100, %v24, 0
    %v108 = vsel %vm100, %v25, 0
    %v111 = vsel %vm100, %v26, 0
    %v114 = vsel %vm100, %v27, 0
    %v117 = vsel %vm100, %v28, 0
    %v120 = vsel %vm100, %v29, 0
    %v123 = vsel %vm100, %v30, 0
    %v126 = vsel %vm100, %v44, 0
    %v129 = vsel %vm100, %v45, 0
    %v132 = vsel %vm100, %v46, 0
    %v135 = vsel %vm100, %v47, 0
    %v138 = vsel %vm100, %v48, 0
    %v141 = vsel %vm100, %v49, 0
    %v144 = vsel %vm100, %v50, 0
    %v147 = vsel %vm100, %v51, 0
    %v150 = vsel %vm100, %v52, 0
    %v153 = vsel %vm100, %v53, 0
    %v156 = vsel %vm100, %v54, 0
    %v159 = vsel %vm100, %v55, 0
    %v162 = vsel %vm100, %v56, 0
    %v165 = vsel %vm100, %v57, 0
    %v168 = vsel %vm100, %v58, 0
    %v171 = vsel %vm100, %v59, 0
    %173 = vmatprep.subr.mxu0 0.0
    %174 = vmatpush1.xpose.msra.mxu0 %v171
    %175 = vmatprep.subr.mxu0 0.0
    %176 = vmatpush1.xpose.msra.mxu0 %v168
    %177 = vmatprep.subr.mxu0 0.0
    %178 = vmatpush1.xpose.msra.mxu0 %v165
    %179 = vmatprep.subr.mxu0 0.0
    %180 = vmatpush1.xpose.msra.mxu0 %v162
    %181 = vmatprep.subr.mxu0 0.0
    %182 = vmatpush1.xpose.msra.mxu0 %v159
    %183 = vmatprep.subr.mxu0 0.0
    %184 = vmatpush1.xpose.msra.mxu0 %v156
    %185 = vmatprep.subr.mxu0 0.0
    %186 = vmatpush1.xpose.msra.mxu0 %v153
    %187 = vmatprep.subr.mxu0 0.0
    %188 = vmatpush1.xpose.msra.mxu0 %v150
    %189 = vmatprep.subr.mxu0 0.0
    %190 = vmatpush1.xpose.msra.mxu0 %v147
    %191 = vmatprep.subr.mxu0 0.0
    %192 = vmatpush1.xpose.msra.mxu0 %v144
    %193 = vmatprep.subr.mxu0 0.0
    %194 = vmatpush1.xpose.msra.mxu0 %v141
    %195 = vmatprep.subr.mxu0 0.0
    %196 = vmatpush1.xpose.msra.mxu0 %v138
    %197 = vmatprep.subr.mxu0 0.0
    %198 = vmatpush1.xpose.msra.mxu0 %v135
    %199 = vmatprep.subr.mxu0 0.0
    %200 = vmatpush1.xpose.msra.mxu0 %v132
    %201 = vmatprep.subr.mxu0 0.0
    %202 = vmatpush1.xpose.msra.mxu0 %v129
    %203 = vmatprep.subr.mxu0 0.0
    %204 = vmatpush1.xpose.msra.mxu0 %v126
    %205 = vmatprep.subr.mxu0 0.0
    %206 = vmatpush2.xpose.msra.mxu0 0.0
    %207 = vmatprep.subr.mxu0 0.0
    %208 = vmatpush2.xpose.msra.mxu0 0.0
    %209 = vmatprep.subr.mxu0 0.0
    %210 = vmatpush2.xpose.msra.mxu0 0.0
    %211 = vmatprep.subr.mxu0 0.0
    %212 = vmatpush2.xpose.msra.mxu0 0.0
    %213 = vmatprep.subr.mxu0 0.0
    %214 = vmatpush2.xpose.msra.mxu0 0.0
    %215 = vmatprep.subr.mxu0 0.0
    %216 = vmatpush2.xpose.msra.mxu0 0.0
    %217 = vmatprep.subr.mxu0 0.0
    %218 = vmatpush2.xpose.msra.mxu0 0.0
    %219 = vmatprep.subr.mxu0 0.0
    %220 = vmatpush2.xpose.msra.mxu0 0.0
    %221 = vmatprep.subr.mxu0 0.0
    %222 = vmatpush2.xpose.msra.mxu0 0.0
    %223 = vmatprep.subr.mxu0 0.0
    %224 = vmatpush2.xpose.msra.mxu0 0.0
    %225 = vmatprep.subr.mxu0 0.0
    %226 = vmatpush2.xpose.msra.mxu0 0.0
    %227 = vmatprep.subr.mxu0 0.0
    %228 = vmatpush2.xpose.msra.mxu0 0.0
    %229 = vmatprep.subr.mxu0 0.0
    %230 = vmatpush2.xpose.msra.mxu0 0.0
    %231 = vmatprep.subr.mxu0 0.0
    %232 = vmatpush2.xpose.msra.mxu0 0.0
    %233 = vmatprep.subr.mxu0 0.0
    %234 = vmatpush2.xpose.msra.mxu0 0.0
    %235 = vmatprep.subr.mxu0 0.0
    %236 = vmatpush2.xpose.msra.mxu0 0.0
    %237 = vmatprep.mubr.f32.mxu0 0.0
    %238 = vmatmul.mubr.f32.gmra.mxu0 %v102
    %v239 = vpop.f32.mrf.mxu0
    %v240 = vadd.f32 %v63, %v239
    %v241 = vpop.f32.mrf.mxu0
    %242 = vmatprep.mubr.f32.mxu0 0.0
    %243 = vmatmul.mubr.f32.gmra.mxu0 %v105
    %v244 = vpop.f32.mrf.mxu0
    %v245 = vadd.f32 %v68, %v244
    %v246 = vpop.f32.mrf.mxu0
    %247 = vmatprep.mubr.f32.mxu0 0.0
    %248 = vmatmul.mubr.f32.gmra.mxu0 %v108
    %v249 = vpop.f32.mrf.mxu0
    %v250 = vadd.f32 %v73, %v249
    %v251 = vpop.f32.mrf.mxu0
    %252 = vmatprep.mubr.f32.mxu0 0.0
    %253 = vmatmul.mubr.f32.gmra.mxu0 %v111
    %v254 = vpop.f32.mrf.mxu0
    %v255 = vadd.f32 %v78, %v254
    %v256 = vpop.f32.mrf.mxu0
    %257 = vmatprep.mubr.f32.mxu0 0.0
    %258 = vmatmul.mubr.f32.gmra.mxu0 %v114
    %v259 = vpop.f32.mrf.mxu0
    %v260 = vadd.f32 %v83, %v259
    %v261 = vpop.f32.mrf.mxu0
    %262 = vmatprep.mubr.f32.mxu0 0.0
    %263 = vmatmul.mubr.f32.gmra.mxu0 %v117
    %v264 = vpop.f32.mrf.mxu0
    %v265 = vadd.f32 %v88, %v264
    %v266 = vpop.f32.mrf.mxu0
    %267 = vmatprep.mubr.f32.mxu0 0.0
    %268 = vmatmul.mubr.f32.gmra.mxu0 %v120
    %v269 = vpop.f32.mrf.mxu0
    %v270 = vadd.f32 %v93, %v269
    %v271 = vpop.f32.mrf.mxu0
    %272 = vmatprep.mubr.f32.mxu0 0.0
    %273 = vmatmul.mubr.f32.gmra.mxu0 %v123
    %v274 = vpop.f32.mrf.mxu0
    %v275 = vadd.f32 %v98, %v274
    %v276 = vpop.f32.mrf.mxu0
    %277 = vdwg.mxu0
    %v278 = vxor.u32 %v240, 2147483648
    %v279 = vxor.u32 %v245, 2147483648
    %v280 = vxor.u32 %v250, 2147483648
    %v281 = vxor.u32 %v255, 2147483648
    %v282 = vmul.f32 %v278, 1.442695
    %v283 = vpow.pop %v282
    %v284 = vmul.f32 %v279, 1.442695
    %v285 = vpow.pop %v284
    %v286 = vmul.f32 %v280, 1.442695
    %v287 = vpow.pop %v286
    %v288 = vmul.f32 %v281, 1.442695
    %v289 = vpow.pop %v288
    %v290 = vadd.f32 %v283, 1.0
    %v291 = vadd.f32 %v285, 1.0
    %v292 = vadd.f32 %v287, 1.0
    %v293 = vadd.f32 %v289, 1.0
    %v294 = vrcp.pop %v290
    %v295 = vmul.f32 1.0, %v294
    %v296 = vrcp.pop %v291
    %v297 = vmul.f32 1.0, %v296
    %v298 = vrcp.pop %v292
    %v299 = vmul.f32 1.0, %v298
    %v300 = vrcp.pop %v293
    %v301 = vmul.f32 1.0, %v300
    %v302 = vtanh.pop %v260
    %v303 = vtanh.pop %v265
    %v304 = vtanh.pop %v270
    %v305 = vtanh.pop %v275
    %v306 = vmul.f32 %v295, %v302
    %v307 = vmul.f32 %v297, %v303
    %v308 = vmul.f32 %v299, %v304
    %v309 = vmul.f32 %v301, %v305
    %v310 = vmax.f32 %v306, 0.0
    %v311 = vmax.f32 %v307, 0.0
    %v312 = vmax.f32 %v308, 0.0
    %v313 = vmax.f32 %v309, 0.0
    %315 = vset.pattern.permute.xlu0 0
    %316 = vperm.xlu0 %315, %v39
    %v317 = vpop.permute.xlu0 %316
    %320 = vset.pattern.permute.xlu0 0
    %321 = vperm.xlu0 %320, %v40
    %v322 = vpop.permute.xlu0 %321
    %325 = vset.pattern.permute.xlu0 0
    %326 = vperm.xlu0 %325, %v41
    %v327 = vpop.permute.xlu0 %326
    %330 = vset.pattern.permute.xlu0 0
    %331 = vperm.xlu0 %330, %v42
    %v332 = vpop.permute.xlu0 %331
    %v334 = vmul.f32 %v310, %v317
    %v335 = vmul.f32 %v311, %v322
    %v336 = vmul.f32 %v312, %v327
    %v337 = vmul.f32 %v313, %v332
    %v338 = vadd.f32 %v334, %v335
    %v339 = vadd.f32 %v338, %v336
    %v340 = vadd.f32 %v339, %v337
    %v341 = vrot.slane %v340, 4
    %v342 = vadd.f32 %v340, %v341
    %v343 = vrot.slane %v342, 2
    %v344 = vadd.f32 %v342, %v343
    %v345 = vrot.slane %v344, 1
    %v346 = vadd.f32 %v344, %v345
    %348 = vset.pattern.permute.xlu0 0
    %349 = vperm.xlu0 %348, %v43
    %v350 = vpop.permute.xlu0 %349
    %v352 = vlaneseq
    %v353 = vshrl.u32 %v352, 7
    %v354 = vsub.s32 0, %v353
    %v355 = vrot.slane %v350, %v354
    %v356 = vadd.f32 %v346, %v355
    %357 = vst [vmem:[#allocation3] sm:$0x1] %v356
    // Predicated region
    $region22: #{tpu_custom_call.1} parent=1 // pred_check
      _
    $region23: #{tpu_custom_call.1} parent=1 // pred_check_branch
      %359 = sbr.rel (0) target = $region25
    $region24: #{tpu_custom_call.1} parent=1 // pred_region
      %s361 = ssub.s32 16, 16
      %362 = vsyncadd [#allocation4], %s361
      %s364 = sshll.u32 [#allocation3], 4
      %s365 = int_to_ptr.vmem [resolvable:$true] %s364
      %367 = dma.vmem_to_hbm [thread:$0]  %s365, 16, %s5, [#allocation4]
    $region25: #{tpu_custom_call.1} parent=1 // pred_fallthru
      _
    // Predicated region
    $region26: #{tpu_custom_call.1} parent=1 // pred_check
      _
    $region27: #{tpu_custom_call.1} parent=1 // pred_check_branch
      %369 = sbr.rel (0) target = $region29
    $region28: #{tpu_custom_call.1} parent=1 // pred_region
      %370 = dma.done [#allocation4], 16
    $region29: #{tpu_custom_call.1} parent=1 // pred_fallthru
      _
    %371 = vsyncpa [#allocation4], 1

</llo_original>
